<compile_context>
chip_gen: v6e
topology: v6e:2x2x1
jax: 0.10.0
libtpu: 0.0.40
codegen_flags: <defaults>
</compile_context>

<pallas_src>
import functools

import jax
import jax.numpy as jnp
import numpy as np
from jax.experimental import pallas as pl
from jax.experimental.pallas import tpu as pltpu

K_PAD = 128          # padded feature width used for every matmul operand
X_FEATS = 2 * 6 * 7  # 84 real input features (padded top row of the conv is dropped)
ONES_COL = X_FEATS   # lane 84 of x_aug carries the constant 1.0 (bias carrier)


# ----------------------------- Pallas kernel --------------------------------

def connect4_kernel(x_ref, w1_ref, w2_ref, wh_ref, out_ref):
    # x: (bn, 128); w1, w2, wh: (128, 128).  Biases are folded into the weight
    # matrices via the constant-1 carrier lane, so the whole net is 3 matmuls.
    h1 = jnp.maximum(
        jnp.dot(x_ref[...], w1_ref[...], preferred_element_type=jnp.float32), 0.0)
    h2 = jnp.maximum(
        jnp.dot(h1, w2_ref[...], preferred_element_type=jnp.float32), 0.0)
    raw = jnp.dot(h2, wh_ref[...], preferred_element_type=jnp.float32)  # (bn, 128)

    # Fused head output: lanes 0..6 = policy logits, lane 7 = value, rest = 0.
    lane = jax.lax.broadcasted_iota(jnp.int32, raw.shape, 1)
    is_pol = lane < 7

    # Softmax over the 7 policy lanes only (mask the rest to a huge negative).
    logits = jnp.where(is_pol, raw, jnp.float32(-1e30))
    m = jnp.max(logits, axis=1, keepdims=True)
    e = jnp.exp(logits - m)
    denom = jnp.sum(e, axis=1, keepdims=True)
    prob = e / denom

    # Lane-dense output slab: policy in 0..6, raw value in 7, zeros elsewhere.
    out_ref[...] = jnp.where(is_pol, prob, raw)


# --------------------------- pallas_call wrappers ----------------------------

def _call_small(x_aug, w1_aug, w2_aug, wh_aug):
    """Single-shot call: no grid, no pipeline, everything as full VMEM refs."""
    n = x_aug.shape[0]
    vmem = pl.BlockSpec(memory_space=pltpu.MemorySpace.VMEM)
    return pl.pallas_call(
        connect4_kernel,
        out_shape=jax.ShapeDtypeStruct((n, K_PAD), jnp.float32),
        in_specs=[vmem, vmem, vmem, vmem],
        out_specs=vmem,
    )(x_aug, w1_aug, w2_aug, wh_aug)


def _call_tiled(x_aug, w1_aug, w2_aug, wh_aug, block_n):
    """Large-batch call: tile over N with a parallel grid axis, weights resident."""
    n = x_aug.shape[0]
    w_spec = pl.BlockSpec((K_PAD, K_PAD), lambda i: (0, 0))
    return pl.pallas_call(
        connect4_kernel,
        out_shape=jax.ShapeDtypeStruct((n, K_PAD), jnp.float32),
        grid=(n // block_n,),
        in_specs=[
            pl.BlockSpec((block_n, K_PAD), lambda i: (i, 0)),
            w_spec, w_spec, w_spec,
        ],
        out_specs=pl.BlockSpec((block_n, K_PAD), lambda i: (i, 0)),
        compiler_params=pltpu.CompilerParams(
            dimension_semantics=("parallel",)),
    )(x_aug, w1_aug, w2_aug, wh_aug)


# ------------------------------ parameters -----------------------------------

def init_params(key):
    """Deterministic synthetic parameters matching Connect4Network.__init__ shapes."""
    ks = jax.random.split(key, 12)
    p = {}
    p["conv1_w"] = 0.05 * jax.random.normal(ks[0], (64, 2, 7, 7), jnp.float32)
    p["conv1_b"] = 0.05 * jax.random.normal(ks[1], (64,), jnp.float32)
    p["bn1_gamma"] = 1.0 + 0.1 * jax.random.normal(ks[2], (64,), jnp.float32)
    p["bn1_beta"] = 0.1 * jax.random.normal(ks[3], (64,), jnp.float32)
    p["bn1_mean"] = 0.05 * jax.random.normal(ks[4], (64,), jnp.float32)
    p["bn1_var"] = jax.random.uniform(ks[5], (64,), jnp.float32, 0.5, 1.5)
    p["conv2_w"] = 0.1 * jax.random.normal(ks[6], (16, 64, 1, 1), jnp.float32)
    p["conv2_b"] = 0.05 * jax.random.normal(ks[7], (16,), jnp.float32)
    p["bn2_gamma"] = 1.0 + 0.1 * jax.random.normal(ks[8], (16,), jnp.float32)
    p["bn2_beta"] = 0.1 * jax.random.normal(ks[9], (16,), jnp.float32)
    p["bn2_mean"] = 0.05 * jax.random.normal(ks[10], (16,), jnp.float32)
    p["bn2_var"] = jax.random.uniform(ks[11], (16,), jnp.float32, 0.5, 1.5)
    kp, kpb, kv, kvb = jax.random.split(jax.random.fold_in(key, 99), 4)
    p["fc_p_w"] = 0.2 * jax.random.normal(kp, (7, 16), jnp.float32)
    p["fc_p_b"] = 0.1 * jax.random.normal(kpb, (7,), jnp.float32)
    p["fc_v_w"] = 0.2 * jax.random.normal(kv, (1, 16), jnp.float32)
    p["fc_v_b"] = 0.1 * jax.random.normal(kvb, (1,), jnp.float32)
    return p


def fold_params(p, eps=1e-5):
    """One-time (offline) fold: BN -> conv, biases -> carrier lane, heads fused.

    Returns three (128, 128) f32 matrices consumed directly by the kernel.
    """
    # --- conv1 (k=7 over the top-padded 7x7 board) + BN1 ---
    s1 = p["bn1_gamma"] / jnp.sqrt(p["bn1_var"] + eps)                 # (64,)
    # ConstantPad2d((0,0,1,0)): padded top row contributes 0 -> drop kh=0 weight rows.
    w1 = p["conv1_w"][:, :, 1:, :].reshape(64, X_FEATS)                 # (64, 84), (c,h,w)
    w1f = (w1 * s1[:, None]).T                                          # (84, 64)
    b1f = (p["conv1_b"] - p["bn1_mean"]) * s1 + p["bn1_beta"]           # (64,)

    # --- conv2 (1x1) + BN2 ---
    s2 = p["bn2_gamma"] / jnp.sqrt(p["bn2_var"] + eps)                  # (16,)
    w2f = (p["conv2_w"].reshape(16, 64) * s2[:, None]).T                # (64, 16)
    b2f = (p["conv2_b"] - p["bn2_mean"]) * s2 + p["bn2_beta"]           # (16,)

    # --- fused policy|value head ---
    wp, bp = p["fc_p_w"].T, p["fc_p_b"]                                 # (16,7), (7,)
    wv, bv = p["fc_v_w"].T, p["fc_v_b"]                                 # (16,1), (1,)

    # Layer 1: rows 0..83 weights, row 84 bias; column 64 carries a constant 1
    # downstream (relu(1*1) == 1), acting as the bias lane for layer 2.
    w1_aug = jnp.zeros((K_PAD, K_PAD), jnp.float32)
    w1_aug = w1_aug.at[:X_FEATS, :64].set(w1f)
    w1_aug = w1_aug.at[ONES_COL, :64].set(b1f)
    w1_aug = w1_aug.at[ONES_COL, 64].set(1.0)

    # Layer 2: rows 0..63 weights, row 64 bias (reads the constant lane of h1);
    # column 16 re-creates the constant 1 for the head bias.
    w2_aug = jnp.zeros((K_PAD, K_PAD), jnp.float32)
    w2_aug = w2_aug.at[:64, :16].set(w2f)
    w2_aug = w2_aug.at[64, :16].set(b2f)
    w2_aug = w2_aug.at[64, 16].set(1.0)

    # Fused head: cols 0..6 policy, col 7 value; row 16 = biases (constant lane of h2).
    wh_aug = jnp.zeros((K_PAD, K_PAD), jnp.float32)
    wh_aug = wh_aug.at[:16, :7].set(wp)
    wh_aug = wh_aug.at[:16, 7:8].set(wv)
    wh_aug = wh_aug.at[16, :7].set(bp)
    wh_aug = wh_aug.at[16, 7].set(bv[0])
    return w1_aug, w2_aug, wh_aug


# ------------------------------ JAX forward -----------------------------------

@functools.partial(jax.jit, static_argnames=("block_n",))
def connect4_forward(x_nchw, w1_aug, w2_aug, wh_aug, block_n=512):
    """Forward pass.  `w*_aug` are the pre-folded matrices from fold_params()."""
    n = x_nchw.shape[0]
    # Flatten the board (c, h, w) and append the constant-1 bias lane; pad to 128.
    x_flat = x_nchw.reshape(n, X_FEATS).astype(jnp.float32)
    x_aug = jnp.concatenate(
        [x_flat,
         jnp.ones((n, 1), jnp.float32),
         jnp.zeros((n, K_PAD - X_FEATS - 1), jnp.float32)], axis=1)     # (N, 128)

    if n <= block_n:
        out = _call_small(x_aug, w1_aug, w2_aug, wh_aug)
    else:
        n_pad = ((n + block_n - 1) // block_n) * block_n
        if n_pad != n:
            x_aug = jnp.pad(x_aug, ((0, n_pad - n), (0, 0)))
        out = _call_tiled(x_aug, w1_aug, w2_aug, wh_aug, block_n)

    policy = out[:n, :7]
    value = out[:n, 7:8]
    # policy_head(...).squeeze() — no-op for batch > 1, squeezes to (7,) for batch == 1
    return jnp.squeeze(policy), value


def connect4_forward_ref(x_nchw, p, eps=1e-5):
    """Independent pure-JAX reference with explicit (unfolded) eval-mode BN."""
    n = x_nchw.shape[0]
    xp = jnp.pad(x_nchw, ((0, 0), (0, 0), (1, 0), (0, 0)))              # (N,2,7,7)
    x_flat = xp.reshape(n, 98)
    h = x_flat @ p["conv1_w"].reshape(64, 98).T + p["conv1_b"]
    h = (h - p["bn1_mean"]) / jnp.sqrt(p["bn1_var"] + eps) * p["bn1_gamma"] + p["bn1_beta"]
    h = jnp.maximum(h, 0.0)
    h2 = h @ p["conv2_w"].reshape(16, 64).T + p["conv2_b"]
    h2 = (h2 - p["bn2_mean"]) / jnp.sqrt(p["bn2_var"] + eps) * p["bn2_gamma"] + p["bn2_beta"]
    h2 = jnp.maximum(h2, 0.0)
    logits = h2 @ p["fc_p_w"].T + p["fc_p_b"]
    policy = jax.nn.softmax(logits, axis=1)
    value = h2 @ p["fc_v_w"].T + p["fc_v_b"]
    return jnp.squeeze(policy), value


if __name__ == "__main__":
    key = jax.random.PRNGKey(0)
    kx, kp = jax.random.split(key)

    params = init_params(kp)
    # BN folding / head fusion happens exactly once, outside the per-call path.
    w1_aug, w2_aug, wh_aug = fold_params(params)
    w1_aug, w2_aug, wh_aug = jax.block_until_ready((w1_aug, w2_aug, wh_aug))

    # --- small batch: no-grid, whole-array VMEM path ---
    x = jax.random.uniform(kx, (8, 2, 6, 7), jnp.float32)
    policy, value = jax.block_until_ready(connect4_forward(x, w1_aug, w2_aug, wh_aug))
    p_ref, v_ref = connect4_forward_ref(x, params)
    np.testing.assert_allclose(np.asarray(policy), np.asarray(p_ref), rtol=1e-4, atol=1e-5)
    np.testing.assert_allclose(np.asarray(value), np.asarray(v_ref), rtol=1e-4, atol=1e-5)
    np.testing.assert_allclose(np.asarray(policy).sum(axis=-1), 1.0, rtol=1e-5, atol=1e-5)

    # --- large batch: N-tiled parallel grid path (megacore on v7x) ---
    xl = jax.random.uniform(jax.random.fold_in(kx, 1), (1536, 2, 6, 7), jnp.float32)
    pol_l, val_l = jax.block_until_ready(
        connect4_forward(xl, w1_aug, w2_aug, wh_aug, block_n=512))
    p_ref_l, v_ref_l = connect4_forward_ref(xl, params)
    np.testing.assert_allclose(np.asarray(pol_l), np.asarray(p_ref_l), rtol=1e-4, atol=1e-5)
    np.testing.assert_allclose(np.asarray(val_l), np.asarray(v_ref_l), rtol=1e-4, atol=1e-5)
    np.testing.assert_allclose(np.asarray(pol_l).sum(axis=-1), 1.0, rtol=1e-5, atol=1e-5)

    print("KERNEL_OK")
</pallas_src>

<mosaic_0001>
module attributes {stable_mosaic.version = 11 : i64} {
  func.func @connect4_kernel(%arg0: memref<8x128xf32, #tpu.memory_space<vmem>>, %arg1: memref<128x128xf32, #tpu.memory_space<vmem>>, %arg2: memref<128x128xf32, #tpu.memory_space<vmem>>, %arg3: memref<128x128xf32, #tpu.memory_space<vmem>>, %arg4: memref<8x128xf32, #tpu.memory_space<vmem>>) attributes {dimension_semantics = [], scalar_prefetch = 0 : i64, scratch_operands = 0 : i64, tpu.core_type = #tpu.core_type<tc>} {
    %c0 = arith.constant 0 : index
    %c0_0 = arith.constant 0 : index
    %0 = vector.load %arg0[%c0, %c0_0] : memref<8x128xf32, #tpu.memory_space<vmem>>, vector<8x128xf32>
    %c0_1 = arith.constant 0 : index
    %c0_2 = arith.constant 0 : index
    %1 = vector.load %arg1[%c0_1, %c0_2] : memref<128x128xf32, #tpu.memory_space<vmem>>, vector<128x128xf32>
    %cst = arith.constant dense<0.000000e+00> : vector<8x128xf32>
    %2 = tpu.matmul %0, %1, %cst {dimension_numbers = #tpu.dot_dimension_numbers<[1], [0], [0], [1], [0, 0, 1, 1], [], []>} : vector<8x128xf32>, vector<128x128xf32>, vector<8x128xf32> -> vector<8x128xf32>
    %cst_3 = arith.constant 0.000000e+00 : f32
    %3 = vector.broadcast %cst_3 : f32 to vector<8x128xf32>
    %4 = arith.maximumf %2, %3 : vector<8x128xf32>
    %c0_4 = arith.constant 0 : index
    %c0_5 = arith.constant 0 : index
    %5 = vector.load %arg2[%c0_4, %c0_5] : memref<128x128xf32, #tpu.memory_space<vmem>>, vector<128x128xf32>
    %cst_6 = arith.constant dense<0.000000e+00> : vector<8x128xf32>
    %6 = tpu.matmul %4, %5, %cst_6 {dimension_numbers = #tpu.dot_dimension_numbers<[1], [0], [0], [1], [0, 0, 1, 1], [], []>} : vector<8x128xf32>, vector<128x128xf32>, vector<8x128xf32> -> vector<8x128xf32>
    %cst_7 = arith.constant 0.000000e+00 : f32
    %7 = vector.broadcast %cst_7 : f32 to vector<8x128xf32>
    %8 = arith.maximumf %6, %7 : vector<8x128xf32>
    %c0_8 = arith.constant 0 : index
    %c0_9 = arith.constant 0 : index
    %9 = vector.load %arg3[%c0_8, %c0_9] : memref<128x128xf32, #tpu.memory_space<vmem>>, vector<128x128xf32>
    %cst_10 = arith.constant dense<0.000000e+00> : vector<8x128xf32>
    %10 = tpu.matmul %8, %9, %cst_10 {dimension_numbers = #tpu.dot_dimension_numbers<[1], [0], [0], [1], [0, 0, 1, 1], [], []>} : vector<8x128xf32>, vector<128x128xf32>, vector<8x128xf32> -> vector<8x128xf32>
    %11 = tpu.iota {dimensions = array<i32: 1>} : vector<8x128xi32>
    %c7_i32 = arith.constant 7 : i32
    %12 = vector.broadcast %c7_i32 : i32 to vector<8x128xi32>
    %13 = arith.cmpi slt, %11, %12 : vector<8x128xi32>
    %cst_11 = arith.constant -1.000000e+30 : f32
    %14 = vector.broadcast %cst_11 : f32 to vector<8x128xf32>
    %15 = arith.select %13, %10, %14 : vector<8x128xi1>, vector<8x128xf32>
    %cst_12 = arith.constant dense<0xFF800000> : vector<8xf32>
    %16 = vector.multi_reduction <maximumf>, %15, %cst_12 [1] : vector<8x128xf32> to vector<8xf32>
    %17 = vector.shape_cast %16 : vector<8xf32> to vector<8x1xf32>
    %18 = vector.broadcast %17 : vector<8x1xf32> to vector<8x128xf32>
    %19 = arith.subf %15, %18 : vector<8x128xf32>
    %20 = math.exp %19 : vector<8x128xf32>
    %cst_13 = arith.constant dense<0.000000e+00> : vector<8xf32>
    %21 = vector.multi_reduction <add>, %20, %cst_13 [1] : vector<8x128xf32> to vector<8xf32>
    %22 = vector.shape_cast %21 : vector<8xf32> to vector<8x1xf32>
    %23 = vector.broadcast %22 : vector<8x1xf32> to vector<8x128xf32>
    %24 = arith.divf %20, %23 : vector<8x128xf32>
    %25 = arith.select %13, %24, %10 : vector<8x128xi1>, vector<8x128xf32>
    %c0_14 = arith.constant 0 : index
    %c0_15 = arith.constant 0 : index
    %26 = vector.load %arg4[%c0_14, %c0_15] : memref<8x128xf32, #tpu.memory_space<vmem>>, vector<8x128xf32>
    tpu.vector_store %arg4[%c0_14, %c0_15], %25 {strides = array<i32>} : memref<8x128xf32, #tpu.memory_space<vmem>>, vector<8x128xf32>,
    return
  }
}

</mosaic_0001>

<llo_original>
// kernel: connect4_forward.1
$region0: #{connect4_forward.1}
  #allocation0 [shape = 'u32[]', space=smem, size = 0x4, offset = 0x4, fixed_abs, tag = 'smem constant byte address 0x4 - core index']
  #allocation1 [shape = 'u32[144,128]{1,0:T(1,128)}', space=vmem, size = 0x12000, scoped, tag = 'internal scratch']
  %s0 = inlined_call_operand.vmem [shape: f32[8,128], index: 0, kind: input, shape index: {}]
  %s1 = inlined_call_operand.vmem [shape: f32[128,128], index: 1, kind: input, shape index: {}]
  %s2 = inlined_call_operand.vmem [shape: f32[128,128], index: 2, kind: input, shape index: {}]
  %s3 = inlined_call_operand.hbm [shape: f32[128,128], index: 3, kind: input, shape index: {}]
  %s4 = inlined_call_operand.vmem [shape: f32[8,128], index: 4, kind: output, shape index: {}]
  %s5 = sld [smem:[#allocation0]]
  $region30: #{connect4_forward.1} parent=0
    _
  %s7 = ssub.s32 1, %s5
  %s8 = scalar_select 0, %s7, %s5
  $region1: #{connect4_forward.1} parent=0
    #allocation2 [shape = 'u8[65536]{0}', space=vmem, size = 0x10000, scoped, tag = 'input window, operand 3, single buffered']
    #allocation3 [shape = 's32[1]{0}', space=sflag, size = 0x4, scoped, tag = 'scoped memory for connect4_forward.1']
    %9 = vsyncpa [#allocation3], 0
    // Predicated region
    $region2: #{connect4_forward.1} parent=1 // pred_check
      _
    $region3: #{connect4_forward.1} parent=1 // pred_check_branch
      %11 = sbr.rel (0) target = $region5
    $region4: #{connect4_forward.1} parent=1 // pred_region
      _
    $region5: #{connect4_forward.1} parent=1 // pred_fallthru
      _
    // Predicated region
    $region6: #{connect4_forward.1} parent=1 // pred_check
      _
    $region7: #{connect4_forward.1} parent=1 // pred_check_branch
      %13 = sbr.rel (0) target = $region9
    $region8: #{connect4_forward.1} parent=1 // pred_region
      _
    $region9: #{connect4_forward.1} parent=1 // pred_fallthru
      _
    // Predicated region
    $region10: #{connect4_forward.1} parent=1 // pred_check
      _
    $region11: #{connect4_forward.1} parent=1 // pred_check_branch
      %15 = sbr.rel (0) target = $region13
    $region12: #{connect4_forward.1} parent=1 // pred_region
      _
    $region13: #{connect4_forward.1} parent=1 // pred_fallthru
      _
    // Predicated region
    $region14: #{connect4_forward.1} parent=1 // pred_check
      _
    $region15: #{connect4_forward.1} parent=1 // pred_check_branch
      %17 = sbr.rel (0) target = $region17
    $region16: #{connect4_forward.1} parent=1 // pred_region
      %s19 = ssub.s32 2048, 2048
      %20 = vsyncadd [#allocation3], %s19
      %s21 = sshll.u32 [#allocation2], 4
      %s22 = int_to_ptr.vmem [resolvable:$true] %s21
      %27 = dma.hbm_to_vmem [thread:$0]  %s3, 2048, %s22, [#allocation3], 128, 128, 8
    $region17: #{connect4_forward.1} parent=1 // pred_fallthru
      _
    // Predicated region
    $region18: #{connect4_forward.1} parent=1 // pred_check
      _
    $region19: #{connect4_forward.1} parent=1 // pred_check_branch
      %29 = sbr.rel (0) target = $region21
    $region20: #{connect4_forward.1} parent=1 // pred_region
      %30 = dma.done [#allocation3], 2048
    $region21: #{connect4_forward.1} parent=1 // pred_fallthru
      _
    %v31 = vld [vmem:[%s0] sm:$0xff]
    %v32 = vld [vmem:[%s1] sm:$0xff]
    %v33 = vld [vmem:[%s1 + $0x8] sm:$0xff]
    %v34 = vld [vmem:[%s1 + $0x10] sm:$0xff]
    %v35 = vld [vmem:[%s1 + $0x18] sm:$0xff]
    %v36 = vld [vmem:[%s1 + $0x20] sm:$0xff]
    %v37 = vld [vmem:[%s1 + $0x28] sm:$0xff]
    %v38 = vld [vmem:[%s1 + $0x30] sm:$0xff]
    %v39 = vld [vmem:[%s1 + $0x38] sm:$0xff]
    %v40 = vld [vmem:[%s1 + $0x40] sm:$0xff]
    %v41 = vld [vmem:[%s1 + $0x48] sm:$0xff]
    %v42 = vld [vmem:[%s1 + $0x50] sm:$0xff]
    %v43 = vld [vmem:[%s1 + $0x58] sm:$0xff]
    %v44 = vld [vmem:[%s1 + $0x60] sm:$0xff]
    %v45 = vld [vmem:[%s1 + $0x68] sm:$0xff]
    %v46 = vld [vmem:[%s1 + $0x70] sm:$0xff]
    %v47 = vld [vmem:[%s1 + $0x78] sm:$0xff]
    %48 = vmatprep.subr.mxu0 0.0
    %49 = vmatpush1.msra.mxu0 %v47
    %50 = vmatprep.subr.mxu0 0.0
    %51 = vmatpush1.msra.mxu0 %v46
    %52 = vmatprep.subr.mxu0 0.0
    %53 = vmatpush1.msra.mxu0 %v45
    %54 = vmatprep.subr.mxu0 0.0
    %55 = vmatpush1.msra.mxu0 %v44
    %56 = vmatprep.subr.mxu0 0.0
    %57 = vmatpush1.msra.mxu0 %v43
    %58 = vmatprep.subr.mxu0 0.0
    %59 = vmatpush1.msra.mxu0 %v42
    %60 = vmatprep.subr.mxu0 0.0
    %61 = vmatpush1.msra.mxu0 %v41
    %62 = vmatprep.subr.mxu0 0.0
    %63 = vmatpush1.msra.mxu0 %v40
    %64 = vmatprep.subr.mxu0 0.0
    %65 = vmatpush1.msra.mxu0 %v39
    %66 = vmatprep.subr.mxu0 0.0
    %67 = vmatpush1.msra.mxu0 %v38
    %68 = vmatprep.subr.mxu0 0.0
    %69 = vmatpush1.msra.mxu0 %v37
    %70 = vmatprep.subr.mxu0 0.0
    %71 = vmatpush1.msra.mxu0 %v36
    %72 = vmatprep.subr.mxu0 0.0
    %73 = vmatpush1.msra.mxu0 %v35
    %74 = vmatprep.subr.mxu0 0.0
    %75 = vmatpush1.msra.mxu0 %v34
    %76 = vmatprep.subr.mxu0 0.0
    %77 = vmatpush1.msra.mxu0 %v33
    %78 = vmatprep.subr.mxu0 0.0
    %79 = vmatpush1.msra.mxu0 %v32
    %80 = vmatprep.subr.mxu0 0.0
    %81 = vmatpush2.msra.mxu0 0.0
    %82 = vmatprep.subr.mxu0 0.0
    %83 = vmatpush2.msra.mxu0 0.0
    %84 = vmatprep.subr.mxu0 0.0
    %85 = vmatpush2.msra.mxu0 0.0
    %86 = vmatprep.subr.mxu0 0.0
    %87 = vmatpush2.msra.mxu0 0.0
    %88 = vmatprep.subr.mxu0 0.0
    %89 = vmatpush2.msra.mxu0 0.0
    %90 = vmatprep.subr.mxu0 0.0
    %91 = vmatpush2.msra.mxu0 0.0
    %92 = vmatprep.subr.mxu0 0.0
    %93 = vmatpush2.msra.mxu0 0.0
    %94 = vmatprep.subr.mxu0 0.0
    %95 = vmatpush2.msra.mxu0 0.0
    %96 = vmatprep.subr.mxu0 0.0
    %97 = vmatpush2.msra.mxu0 0.0
    %98 = vmatprep.subr.mxu0 0.0
    %99 = vmatpush2.msra.mxu0 0.0
    %100 = vmatprep.subr.mxu0 0.0
    %101 = vmatpush2.msra.mxu0 0.0
    %102 = vmatprep.subr.mxu0 0.0
    %103 = vmatpush2.msra.mxu0 0.0
    %104 = vmatprep.subr.mxu0 0.0
    %105 = vmatpush2.msra.mxu0 0.0
    %106 = vmatprep.subr.mxu0 0.0
    %107 = vmatpush2.msra.mxu0 0.0
    %108 = vmatprep.subr.mxu0 0.0
    %109 = vmatpush2.msra.mxu0 0.0
    %110 = vmatprep.subr.mxu0 0.0
    %111 = vmatpush2.msra.mxu0 0.0
    %112 = vmatprep.mubr.f32.mxu0 0.0
    %113 = vmatmul.mubr.f32.gmra.mxu0 %v31
    %v114 = vpop.f32.mrf.mxu0
    %v115 = vadd.f32 0.0, %v114
    %v116 = vpop.f32.mrf.mxu0
    %117 = vdwg.mxu0
    %v118 = vmax.f32 %v115, 0.0
    %v119 = vld [vmem:[%s2] sm:$0xff]
    %v120 = vld [vmem:[%s2 + $0x8] sm:$0xff]
    %v121 = vld [vmem:[%s2 + $0x10] sm:$0xff]
    %v122 = vld [vmem:[%s2 + $0x18] sm:$0xff]
    %v123 = vld [vmem:[%s2 + $0x20] sm:$0xff]
    %v124 = vld [vmem:[%s2 + $0x28] sm:$0xff]
    %v125 = vld [vmem:[%s2 + $0x30] sm:$0xff]
    %v126 = vld [vmem:[%s2 + $0x38] sm:$0xff]
    %v127 = vld [vmem:[%s2 + $0x40] sm:$0xff]
    %v128 = vld [vmem:[%s2 + $0x48] sm:$0xff]
    %v129 = vld [vmem:[%s2 + $0x50] sm:$0xff]
    %v130 = vld [vmem:[%s2 + $0x58] sm:$0xff]
    %v131 = vld [vmem:[%s2 + $0x60] sm:$0xff]
    %v132 = vld [vmem:[%s2 + $0x68] sm:$0xff]
    %v133 = vld [vmem:[%s2 + $0x70] sm:$0xff]
    %v134 = vld [vmem:[%s2 + $0x78] sm:$0xff]
    %135 = vmatprep.subr.mxu0 0.0
    %136 = vmatpush1.msra.mxu0 %v134
    %137 = vmatprep.subr.mxu0 0.0
    %138 = vmatpush1.msra.mxu0 %v133
    %139 = vmatprep.subr.mxu0 0.0
    %140 = vmatpush1.msra.mxu0 %v132
    %141 = vmatprep.subr.mxu0 0.0
    %142 = vmatpush1.msra.mxu0 %v131
    %143 = vmatprep.subr.mxu0 0.0
    %144 = vmatpush1.msra.mxu0 %v130
    %145 = vmatprep.subr.mxu0 0.0
    %146 = vmatpush1.msra.mxu0 %v129
    %147 = vmatprep.subr.mxu0 0.0
    %148 = vmatpush1.msra.mxu0 %v128
    %149 = vmatprep.subr.mxu0 0.0
    %150 = vmatpush1.msra.mxu0 %v127
    %151 = vmatprep.subr.mxu0 0.0
    %152 = vmatpush1.msra.mxu0 %v126
    %153 = vmatprep.subr.mxu0 0.0
    %154 = vmatpush1.msra.mxu0 %v125
    %155 = vmatprep.subr.mxu0 0.0
    %156 = vmatpush1.msra.mxu0 %v124
    %157 = vmatprep.subr.mxu0 0.0
    %158 = vmatpush1.msra.mxu0 %v123
    %159 = vmatprep.subr.mxu0 0.0
    %160 = vmatpush1.msra.mxu0 %v122
    %161 = vmatprep.subr.mxu0 0.0
    %162 = vmatpush1.msra.mxu0 %v121
    %163 = vmatprep.subr.mxu0 0.0
    %164 = vmatpush1.msra.mxu0 %v120
    %165 = vmatprep.subr.mxu0 0.0
    %166 = vmatpush1.msra.mxu0 %v119
    %167 = vmatprep.subr.mxu0 0.0
    %168 = vmatpush2.msra.mxu0 0.0
    %169 = vmatprep.subr.mxu0 0.0
    %170 = vmatpush2.msra.mxu0 0.0
    %171 = vmatprep.subr.mxu0 0.0
    %172 = vmatpush2.msra.mxu0 0.0
    %173 = vmatprep.subr.mxu0 0.0
    %174 = vmatpush2.msra.mxu0 0.0
    %175 = vmatprep.subr.mxu0 0.0
    %176 = vmatpush2.msra.mxu0 0.0
    %177 = vmatprep.subr.mxu0 0.0
    %178 = vmatpush2.msra.mxu0 0.0
    %179 = vmatprep.subr.mxu0 0.0
    %180 = vmatpush2.msra.mxu0 0.0
    %181 = vmatprep.subr.mxu0 0.0
    %182 = vmatpush2.msra.mxu0 0.0
    %183 = vmatprep.subr.mxu0 0.0
    %184 = vmatpush2.msra.mxu0 0.0
    %185 = vmatprep.subr.mxu0 0.0
    %186 = vmatpush2.msra.mxu0 0.0
    %187 = vmatprep.subr.mxu0 0.0
    %188 = vmatpush2.msra.mxu0 0.0
    %189 = vmatprep.subr.mxu0 0.0
    %190 = vmatpush2.msra.mxu0 0.0
    %191 = vmatprep.subr.mxu0 0.0
    %192 = vmatpush2.msra.mxu0 0.0
    %193 = vmatprep.subr.mxu0 0.0
    %194 = vmatpush2.msra.mxu0 0.0
    %195 = vmatprep.subr.mxu0 0.0
    %196 = vmatpush2.msra.mxu0 0.0
    %197 = vmatprep.subr.mxu0 0.0
    %198 = vmatpush2.msra.mxu0 0.0
    %199 = vmatprep.mubr.f32.mxu0 0.0
    %200 = vmatmul.mubr.f32.gmra.mxu0 %v118
    %v201 = vpop.f32.mrf.mxu0
    %v202 = vadd.f32 0.0, %v201
    %v203 = vpop.f32.mrf.mxu0
    %204 = vdwg.mxu0
    %v205 = vmax.f32 %v202, 0.0
    %v206 = vld [vmem:[#allocation2] sm:$0xff]
    %v207 = vld [vmem:[#allocation2 + $0x8] sm:$0xff]
    %v208 = vld [vmem:[#allocation2 + $0x10] sm:$0xff]
    %v209 = vld [vmem:[#allocation2 + $0x18] sm:$0xff]
    %v210 = vld [vmem:[#allocation2 + $0x20] sm:$0xff]
    %v211 = vld [vmem:[#allocation2 + $0x28] sm:$0xff]
    %v212 = vld [vmem:[#allocation2 + $0x30] sm:$0xff]
    %v213 = vld [vmem:[#allocation2 + $0x38] sm:$0xff]
    %v214 = vld [vmem:[#allocation2 + $0x40] sm:$0xff]
    %v215 = vld [vmem:[#allocation2 + $0x48] sm:$0xff]
    %v216 = vld [vmem:[#allocation2 + $0x50] sm:$0xff]
    %v217 = vld [vmem:[#allocation2 + $0x58] sm:$0xff]
    %v218 = vld [vmem:[#allocation2 + $0x60] sm:$0xff]
    %v219 = vld [vmem:[#allocation2 + $0x68] sm:$0xff]
    %v220 = vld [vmem:[#allocation2 + $0x70] sm:$0xff]
    %v221 = vld [vmem:[#allocation2 + $0x78] sm:$0xff]
    %222 = vmatprep.subr.mxu0 0.0
    %223 = vmatpush1.msra.mxu0 %v221
    %224 = vmatprep.subr.mxu0 0.0
    %225 = vmatpush1.msra.mxu0 %v220
    %226 = vmatprep.subr.mxu0 0.0
    %227 = vmatpush1.msra.mxu0 %v219
    %228 = vmatprep.subr.mxu0 0.0
    %229 = vmatpush1.msra.mxu0 %v218
    %230 = vmatprep.subr.mxu0 0.0
    %231 = vmatpush1.msra.mxu0 %v217
    %232 = vmatprep.subr.mxu0 0.0
    %233 = vmatpush1.msra.mxu0 %v216
    %234 = vmatprep.subr.mxu0 0.0
    %235 = vmatpush1.msra.mxu0 %v215
    %236 = vmatprep.subr.mxu0 0.0
    %237 = vmatpush1.msra.mxu0 %v214
    %238 = vmatprep.subr.mxu0 0.0
    %239 = vmatpush1.msra.mxu0 %v213
    %240 = vmatprep.subr.mxu0 0.0
    %241 = vmatpush1.msra.mxu0 %v212
    %242 = vmatprep.subr.mxu0 0.0
    %243 = vmatpush1.msra.mxu0 %v211
    %244 = vmatprep.subr.mxu0 0.0
    %245 = vmatpush1.msra.mxu0 %v210
    %246 = vmatprep.subr.mxu0 0.0
    %247 = vmatpush1.msra.mxu0 %v209
    %248 = vmatprep.subr.mxu0 0.0
    %249 = vmatpush1.msra.mxu0 %v208
    %250 = vmatprep.subr.mxu0 0.0
    %251 = vmatpush1.msra.mxu0 %v207
    %252 = vmatprep.subr.mxu0 0.0
    %253 = vmatpush1.msra.mxu0 %v206
    %254 = vmatprep.subr.mxu0 0.0
    %255 = vmatpush2.msra.mxu0 0.0
    %256 = vmatprep.subr.mxu0 0.0
    %257 = vmatpush2.msra.mxu0 0.0
    %258 = vmatprep.subr.mxu0 0.0
    %259 = vmatpush2.msra.mxu0 0.0
    %260 = vmatprep.subr.mxu0 0.0
    %261 = vmatpush2.msra.mxu0 0.0
    %262 = vmatprep.subr.mxu0 0.0
    %263 = vmatpush2.msra.mxu0 0.0
    %264 = vmatprep.subr.mxu0 0.0
    %265 = vmatpush2.msra.mxu0 0.0
    %266 = vmatprep.subr.mxu0 0.0
    %267 = vmatpush2.msra.mxu0 0.0
    %268 = vmatprep.subr.mxu0 0.0
    %269 = vmatpush2.msra.mxu0 0.0
    %270 = vmatprep.subr.mxu0 0.0
    %271 = vmatpush2.msra.mxu0 0.0
    %272 = vmatprep.subr.mxu0 0.0
    %273 = vmatpush2.msra.mxu0 0.0
    %274 = vmatprep.subr.mxu0 0.0
    %275 = vmatpush2.msra.mxu0 0.0
    %276 = vmatprep.subr.mxu0 0.0
    %277 = vmatpush2.msra.mxu0 0.0
    %278 = vmatprep.subr.mxu0 0.0
    %279 = vmatpush2.msra.mxu0 0.0
    %280 = vmatprep.subr.mxu0 0.0
    %281 = vmatpush2.msra.mxu0 0.0
    %282 = vmatprep.subr.mxu0 0.0
    %283 = vmatpush2.msra.mxu0 0.0
    %284 = vmatprep.subr.mxu0 0.0
    %285 = vmatpush2.msra.mxu0 0.0
    %286 = vmatprep.mubr.f32.mxu0 0.0
    %287 = vmatmul.mubr.f32.gmra.mxu0 %v205
    %v288 = vpop.f32.mrf.mxu0
    %v289 = vadd.f32 0.0, %v288
    %v290 = vpop.f32.mrf.mxu0
    %291 = vdwg.mxu0
    %v292 = vlaneseq
    %v293 = vand.u32 %v292, 127
    %vm294 = vcmp.lt.s32.totalorder %v293, 7
    %v295 = vsel %vm294, %v289, -1e+30
    %296 = vmax.xlane.f32.xlu0 %v295
    %v297 = vpop.xlane.xlu0 %296
    %v298 = vsub.f32 %v295, %v297
    %v299 = vmul.f32 %v298, 1.442695
    %v300 = vpow.pop %v299
    %301 = vadd.xlane.f32.xlu0 %v300
    %v302 = vpop.xlane.xlu0 %301
    %v303 = vrcp.pop %v302
    %v304 = vmul.f32 %v300, %v303
    %v305 = vsel %vm294, %v304, %v289
    %306 = vst [vmem:[%s4] sm:$0xff] %v305
    // Predicated region
    $region22: #{connect4_forward.1} parent=1 // pred_check
      _
    $region23: #{connect4_forward.1} parent=1 // pred_check_branch
      %308 = sbr.rel (0) target = $region25
    $region24: #{connect4_forward.1} parent=1 // pred_region
      _
    $region25: #{connect4_forward.1} parent=1 // pred_fallthru
      _
    // Predicated region
    $region26: #{connect4_forward.1} parent=1 // pred_check
      _
    $region27: #{connect4_forward.1} parent=1 // pred_check_branch
      %310 = sbr.rel (0) target = $region29
    $region28: #{connect4_forward.1} parent=1 // pred_region
      _
    $region29: #{connect4_forward.1} parent=1 // pred_fallthru
      _
    %311 = vsyncpa [#allocation3], 1

</llo_original>
